<compile_context>
chip_gen: v5e
topology: v5e:2x2
jax: 0.10.0
libtpu: 0.0.40
codegen_flags: <defaults>
</compile_context>

<pallas_src>
import functools

import jax
import jax.numpy as jnp
import numpy as np
from jax.experimental import pallas as pl
from jax.experimental.pallas import tpu as pltpu


def _skvq_fake_quant_kernel(x_ref, o_ref, *, max_int, clip):
    # x_ref / o_ref: (tile_rows, gsize); each row is exactly one quantization group.
    x = x_ref[...].astype(jnp.float32)
    gmin = jnp.min(x, axis=-1, keepdims=True) * clip
    gmax = jnp.max(x, axis=-1, keepdims=True) * clip
    zp = gmin
    scale = jnp.maximum((gmax - gmin) / max_int, 1e-5)
    # Exact per-group reciprocal (tiny array) so the per-element path is multiply-only.
    inv_scale = 1.0 / scale
    q = jnp.round(jnp.clip((x - zp) * inv_scale, 0.0, max_int))
    o_ref[...] = (q * scale + zp).astype(o_ref.dtype)


def _quant_rows(x2, *, gsize, max_int, clip, target_block_bytes, vmem_limit_bytes):
    """Fake-quantize a (rows, gsize) slab where each row is one group."""
    rows, g = x2.shape
    assert g == gsize
    row_bytes = gsize * x2.dtype.itemsize

    if rows <= 8:
        tile_rows = rows                       # block == full dim, always legal
    else:
        tile_rows = min(rows, max(8, target_block_bytes // max(1, row_bytes)))
        tile_rows = max(8, (tile_rows // 8) * 8)   # multiple of 8 sublanes

    grid = (pl.cdiv(rows, tile_rows),)          # masked tail handles any rows count

    return pl.pallas_call(
        functools.partial(_skvq_fake_quant_kernel, max_int=max_int, clip=clip),
        out_shape=jax.ShapeDtypeStruct((rows, gsize), x2.dtype),
        grid_spec=pltpu.PrefetchScalarGridSpec(
            num_scalar_prefetch=0,
            grid=grid,
            in_specs=[pl.BlockSpec((tile_rows, gsize), lambda i: (i, 0))],
            out_specs=pl.BlockSpec((tile_rows, gsize), lambda i: (i, 0)),
        ),
        compiler_params=pltpu.CompilerParams(
            dimension_semantics=("parallel",),
            vmem_limit_bytes=vmem_limit_bytes),
    )(x2)


def skvq_fake_quant_pallas(x, *, qbits, gsize, clip,
                           target_block_bytes=2 * 1024 * 1024,
                           vmem_limit_bytes=32 * 1024 * 1024):
    """x: (bs, num_heads, seqlen, head_dim). Returns fake-quantized tensor (same shape/dtype)."""
    bs, nh, sl, hd = x.shape
    hidden = nh * hd
    if sl == 0 or qbits == 16:
        return x
    assert round(qbits) == qbits, "fractional bitwidths (e.g. 1.5) not supported here"
    assert hidden % gsize == 0
    max_int = float((1 << int(qbits)) - 1)
    clip = float(clip)

    if hd % gsize == 0:
        # Common case (e.g. hd=128, gsize=32/64/128): each group lies entirely inside
        # one head and is contiguous, so (bs, nh, sl, hd) collapses to (rows, gsize)
        # with a FREE reshape -- one HBM read + one HBM write total, no transposes.
        rows = bs * nh * sl * (hd // gsize)
        x2 = x.reshape(rows, gsize)
        out2 = _quant_rows(x2, gsize=gsize, max_int=max_int, clip=clip,
                           target_block_bytes=target_block_bytes,
                           vmem_limit_bytes=vmem_limit_bytes)
        return out2.reshape(bs, nh, sl, hd)
    else:
        # Groups span head boundaries: fall back to the (bs, seq, hidden) layout
        # (one transpose each way, exactly like the PyTorch reference path).
        rows = bs * sl * (hidden // gsize)
        x2 = jnp.transpose(x, (0, 2, 1, 3)).reshape(rows, gsize)
        out2 = _quant_rows(x2, gsize=gsize, max_int=max_int, clip=clip,
                           target_block_bytes=target_block_bytes,
                           vmem_limit_bytes=vmem_limit_bytes)
        return jnp.transpose(out2.reshape(bs, sl, nh, hd), (0, 2, 1, 3))


class SKVQuantProcessorPallas:
    """JAX/Pallas port of SKVQuantProcessor for the default 'py' fake-quant path."""

    def __init__(self, K_target_bitwidth, V_target_bitwidth, gsize, hidden,
                 clipping=None, fake_quant=True):
        assert fake_quant, "only fake_quant=True path implemented"
        self.K_target_bitwidth = K_target_bitwidth
        self.V_target_bitwidth = V_target_bitwidth
        self.gsize = gsize
        self.hidden = hidden
        self.clipping = clipping if clipping is not None else [1.0]
        self.layer_idx = 0

    def _quant(self, ttype, tensor):
        if tensor is None:
            return (None, None, None)
        bs, nh, sl, hd = tensor.shape
        assert nh * hd == self.hidden
        qbits = self.K_target_bitwidth if ttype == 'k' else self.V_target_bitwidth
        clip = self.clipping[self.layer_idx]
        res = skvq_fake_quant_pallas(tensor, qbits=qbits, gsize=self.gsize, clip=clip)
        return (res, None, None)   # fake_quant path returns (tensor, None, None)

    def forward(self, K, V):
        return (self._quant('k', K), self._quant('v', V))

    __call__ = forward


def _reference_fake_quant(x, qbits, gsize, clip):
    """Pure-JAX reference mirroring quant_pytorch (fake_quant, no reorder/smooth).

    Uses the same (x - zp) * (1/scale) form as the kernel (differs from torch's
    .div(scale) by <= 1 ulp before rounding); all other steps match torch exactly.
    """
    bs, nh, sl, hd = x.shape
    hidden = nh * hd
    max_int = float((1 << int(qbits)) - 1)
    t = jnp.transpose(x, (0, 2, 1, 3)).reshape(bs, sl, hidden // gsize, gsize)
    t = t.astype(jnp.float32)
    gmin = jnp.min(t, axis=-1, keepdims=True) * clip
    gmax = jnp.max(t, axis=-1, keepdims=True) * clip
    zp = gmin
    scale = jnp.maximum((gmax - gmin) / max_int, 1e-5)
    q = jnp.round(jnp.clip((t - zp) * (1.0 / scale), 0.0, max_int))
    res = (q * scale + zp).astype(x.dtype)
    return jnp.transpose(res.reshape(bs, sl, nh, hd), (0, 2, 1, 3))


if __name__ == "__main__":
    # Small shapes: bs=2, num_heads=4, seqlen=16, head_dim=32 -> hidden=128.
    bs, nh, sl, hd = 2, 4, 16, 32
    hidden = nh * hd

    key = jax.random.PRNGKey(0)
    kk, kv = jax.random.split(key)
    K = jax.random.normal(kk, (bs, nh, sl, hd), dtype=jnp.float32)
    V = jax.random.normal(kv, (bs, nh, sl, hd), dtype=jnp.float32)

    # Case 1: gsize=16 divides head_dim -> transpose-free direct path (K 4-bit, V 2-bit).
    proc = SKVQuantProcessorPallas(K_target_bitwidth=4, V_target_bitwidth=2,
                                   gsize=16, hidden=hidden, clipping=[0.95],
                                   fake_quant=True)
    proc.layer_idx = 0
    (Kq, _, _), (Vq, _, _) = proc(K, V)
    Kq = jax.block_until_ready(Kq)
    Vq = jax.block_until_ready(Vq)
    np.testing.assert_allclose(np.asarray(Kq),
                               np.asarray(_reference_fake_quant(K, 4, 16, 0.95)),
                               rtol=1e-5, atol=1e-5)
    np.testing.assert_allclose(np.asarray(Vq),
                               np.asarray(_reference_fake_quant(V, 2, 16, 0.95)),
                               rtol=1e-5, atol=1e-5)
    assert Kq.shape == K.shape and Vq.shape == V.shape

    # Case 2: gsize=64 spans heads (hd=32) -> transpose fallback path (K 3-bit, V 4-bit).
    proc2 = SKVQuantProcessorPallas(K_target_bitwidth=3, V_target_bitwidth=4,
                                    gsize=64, hidden=hidden, clipping=[1.0],
                                    fake_quant=True)
    proc2.layer_idx = 0
    (Kq2, _, _), (Vq2, _, _) = proc2(K, V)
    Kq2 = jax.block_until_ready(Kq2)
    Vq2 = jax.block_until_ready(Vq2)
    np.testing.assert_allclose(np.asarray(Kq2),
                               np.asarray(_reference_fake_quant(K, 3, 64, 1.0)),
                               rtol=1e-5, atol=1e-5)
    np.testing.assert_allclose(np.asarray(Vq2),
                               np.asarray(_reference_fake_quant(V, 4, 64, 1.0)),
                               rtol=1e-5, atol=1e-5)
    assert Kq2.shape == K.shape and Vq2.shape == V.shape

    print("KERNEL_OK")
</pallas_src>

<mosaic_0001>
module attributes {stable_mosaic.version = 11 : i64} {
  func.func @_skvq_fake_quant_kernel(%arg0: i32, %arg1: memref<256x16xf32, #tpu.memory_space<vmem>>, %arg2: memref<256x16xf32, #tpu.memory_space<vmem>>) attributes {dimension_semantics = [#tpu.dimension_semantics<parallel>], iteration_bounds = array<i64: 1>, scalar_prefetch = 0 : i64, scratch_operands = 0 : i64, tpu.core_type = #tpu.core_type<tc>, window_params = [{transform_indices = @transform_0, window_bounds = array<i64: 256, 16>}, {transform_indices = @transform_1, window_bounds = array<i64: 256, 16>}]} {
    %c0 = arith.constant 0 : index
    %c0_0 = arith.constant 0 : index
    %0 = vector.load %arg1[%c0, %c0_0] : memref<256x16xf32, #tpu.memory_space<vmem>>, vector<256x16xf32>
    %cst = arith.constant dense<0x7F800000> : vector<256xf32>
    %1 = vector.multi_reduction <minimumf>, %0, %cst [1] : vector<256x16xf32> to vector<256xf32>
    %2 = vector.shape_cast %1 : vector<256xf32> to vector<256x1xf32>
    %cst_1 = arith.constant 0.949999988 : f32
    %3 = vector.broadcast %cst_1 : f32 to vector<256x1xf32>
    %4 = arith.mulf %2, %3 : vector<256x1xf32>
    %cst_2 = arith.constant dense<0xFF800000> : vector<256xf32>
    %5 = vector.multi_reduction <maximumf>, %0, %cst_2 [1] : vector<256x16xf32> to vector<256xf32>
    %6 = vector.shape_cast %5 : vector<256xf32> to vector<256x1xf32>
    %cst_3 = arith.constant 0.949999988 : f32
    %7 = vector.broadcast %cst_3 : f32 to vector<256x1xf32>
    %8 = arith.mulf %6, %7 : vector<256x1xf32>
    %9 = arith.subf %8, %4 : vector<256x1xf32>
    %cst_4 = arith.constant 1.500000e+01 : f32
    %10 = vector.broadcast %cst_4 : f32 to vector<256x1xf32>
    %11 = arith.divf %9, %10 : vector<256x1xf32>
    %cst_5 = arith.constant 9.99999974E-6 : f32
    %12 = vector.broadcast %cst_5 : f32 to vector<256x1xf32>
    %13 = arith.maximumf %11, %12 : vector<256x1xf32>
    %cst_6 = arith.constant 1.000000e+00 : f32
    %14 = vector.broadcast %cst_6 : f32 to vector<256x1xf32>
    %15 = arith.divf %14, %13 : vector<256x1xf32>
    %16 = vector.broadcast %4 : vector<256x1xf32> to vector<256x16xf32>
    %17 = arith.subf %0, %16 : vector<256x16xf32>
    %18 = vector.broadcast %15 : vector<256x1xf32> to vector<256x16xf32>
    %19 = arith.mulf %17, %18 : vector<256x16xf32>
    %cst_7 = arith.constant 0.000000e+00 : f32
    %cst_8 = arith.constant 1.500000e+01 : f32
    %20 = vector.broadcast %cst_7 : f32 to vector<256x16xf32>
    %21 = arith.maximumf %20, %19 : vector<256x16xf32>
    %22 = vector.broadcast %cst_8 : f32 to vector<256x16xf32>
    %23 = arith.minimumf %22, %21 : vector<256x16xf32>
    %24 = math.roundeven %23 : vector<256x16xf32>
    %25 = vector.broadcast %13 : vector<256x1xf32> to vector<256x16xf32>
    %26 = arith.mulf %24, %25 : vector<256x16xf32>
    %27 = vector.broadcast %4 : vector<256x1xf32> to vector<256x16xf32>
    %28 = arith.addf %26, %27 : vector<256x16xf32>
    %c0_9 = arith.constant 0 : index
    %c0_10 = arith.constant 0 : index
    %29 = vector.load %arg2[%c0_9, %c0_10] : memref<256x16xf32, #tpu.memory_space<vmem>>, vector<256x16xf32>
    tpu.vector_store %arg2[%c0_9, %c0_10], %28 {strides = array<i32>} : memref<256x16xf32, #tpu.memory_space<vmem>>, vector<256x16xf32>,
    return
  }
  func.func @transform_0(%arg0: i32) -> (i32, i32) {
    %c0_i32 = arith.constant 0 : i32
    %c0_i32_0 = arith.constant 0 : i32
    return %arg0, %c0_i32 : i32, i32
  }
  func.func @transform_1(%arg0: i32) -> (i32, i32) {
    %c0_i32 = arith.constant 0 : i32
    %c0_i32_0 = arith.constant 0 : i32
    return %arg0, %c0_i32 : i32, i32
  }
}

</mosaic_0001>

<llo_original>
// kernel: tpu_custom_call.1
$region0: #{tpu_custom_call.1}
  #allocation0 [shape = 'u32[]', space=smem, size = 0x4, offset = 0x4, fixed_abs, tag = 'smem constant byte address 0x4 - core index']
  #allocation1 [shape = 'u32[72,128]{1,0:T(1,128)}', space=vmem, size = 0x9000, scoped, tag = 'internal scratch']
  %s0 = inlined_call_operand.vmem [shape: f32[256,16], index: 0, kind: input, shape index: {}]
  %s1 = inlined_call_operand.vmem [shape: f32[256,16], index: 1, kind: output, shape index: {}]
  %s2 = sld [smem:[#allocation0]]
  $region14: #{tpu_custom_call.1} parent=0
    _
  %s4 = ssub.s32 1, %s2
  %s5 = scalar_select 0, %s4, %s2
  // Predicated region
  $region2: #{tpu_custom_call.1} parent=0 // pred_check
    _
  $region3: #{tpu_custom_call.1} parent=0 // pred_check_branch
    %7 = sbr.rel (0) target = $region5
  $region4: #{tpu_custom_call.1} parent=0 // pred_region
    _
  $region5: #{tpu_custom_call.1} parent=0 // pred_fallthru
    _
  %v8 = vld [vmem:[%s0] sm:$0xff]
  %v9 = vld [vmem:[%s0 + $0x8] sm:$0xff]
  %v10 = vld [vmem:[%s0 + $0x10] sm:$0xff]
  %v11 = vld [vmem:[%s0 + $0x18] sm:$0xff]
  %v12 = vld [vmem:[%s0 + $0x20] sm:$0xff]
  %v13 = vld [vmem:[%s0 + $0x28] sm:$0xff]
  %v14 = vld [vmem:[%s0 + $0x30] sm:$0xff]
  %v15 = vld [vmem:[%s0 + $0x38] sm:$0xff]
  %v16 = vld [vmem:[%s0 + $0x40] sm:$0xff]
  %v17 = vld [vmem:[%s0 + $0x48] sm:$0xff]
  %v18 = vld [vmem:[%s0 + $0x50] sm:$0xff]
  %v19 = vld [vmem:[%s0 + $0x58] sm:$0xff]
  %v20 = vld [vmem:[%s0 + $0x60] sm:$0xff]
  %v21 = vld [vmem:[%s0 + $0x68] sm:$0xff]
  %v22 = vld [vmem:[%s0 + $0x70] sm:$0xff]
  %v23 = vld [vmem:[%s0 + $0x78] sm:$0xff]
  %v24 = vld [vmem:[%s0 + $0x80] sm:$0xff]
  %v25 = vld [vmem:[%s0 + $0x88] sm:$0xff]
  %v26 = vld [vmem:[%s0 + $0x90] sm:$0xff]
  %v27 = vld [vmem:[%s0 + $0x98] sm:$0xff]
  %v28 = vld [vmem:[%s0 + $0xa0] sm:$0xff]
  %v29 = vld [vmem:[%s0 + $0xa8] sm:$0xff]
  %v30 = vld [vmem:[%s0 + $0xb0] sm:$0xff]
  %v31 = vld [vmem:[%s0 + $0xb8] sm:$0xff]
  %v32 = vld [vmem:[%s0 + $0xc0] sm:$0xff]
  %v33 = vld [vmem:[%s0 + $0xc8] sm:$0xff]
  %v34 = vld [vmem:[%s0 + $0xd0] sm:$0xff]
  %v35 = vld [vmem:[%s0 + $0xd8] sm:$0xff]
  %v36 = vld [vmem:[%s0 + $0xe0] sm:$0xff]
  %v37 = vld [vmem:[%s0 + $0xe8] sm:$0xff]
  %v38 = vld [vmem:[%s0 + $0xf0] sm:$0xff]
  %v39 = vld [vmem:[%s0 + $0xf8] sm:$0xff]
  %vm40 = vcmask 130048
  %v41 = vsel %vm40, %v8, inf
  %42 = vmin.xlane.f32.xlu0 %v41
  %v43 = vpop.xlane.xlu0 %42
  %v44 = vsel %vm40, %v9, inf
  %45 = vmin.xlane.f32.xlu0 %v44
  %v46 = vpop.xlane.xlu0 %45
  %v47 = vsel %vm40, %v10, inf
  %48 = vmin.xlane.f32.xlu0 %v47
  %v49 = vpop.xlane.xlu0 %48
  %v50 = vsel %vm40, %v11, inf
  %51 = vmin.xlane.f32.xlu0 %v50
  %v52 = vpop.xlane.xlu0 %51
  %v53 = vsel %vm40, %v12, inf
  %54 = vmin.xlane.f32.xlu0 %v53
  %v55 = vpop.xlane.xlu0 %54
  %v56 = vsel %vm40, %v13, inf
  %57 = vmin.xlane.f32.xlu0 %v56
  %v58 = vpop.xlane.xlu0 %57
  %v59 = vsel %vm40, %v14, inf
  %60 = vmin.xlane.f32.xlu0 %v59
  %v61 = vpop.xlane.xlu0 %60
  %v62 = vsel %vm40, %v15, inf
  %63 = vmin.xlane.f32.xlu0 %v62
  %v64 = vpop.xlane.xlu0 %63
  %v65 = vsel %vm40, %v16, inf
  %66 = vmin.xlane.f32.xlu0 %v65
  %v67 = vpop.xlane.xlu0 %66
  %v68 = vsel %vm40, %v17, inf
  %69 = vmin.xlane.f32.xlu0 %v68
  %v70 = vpop.xlane.xlu0 %69
  %v71 = vsel %vm40, %v18, inf
  %72 = vmin.xlane.f32.xlu0 %v71
  %v73 = vpop.xlane.xlu0 %72
  %v74 = vsel %vm40, %v19, inf
  %75 = vmin.xlane.f32.xlu0 %v74
  %v76 = vpop.xlane.xlu0 %75
  %v77 = vsel %vm40, %v20, inf
  %78 = vmin.xlane.f32.xlu0 %v77
  %v79 = vpop.xlane.xlu0 %78
  %v80 = vsel %vm40, %v21, inf
  %81 = vmin.xlane.f32.xlu0 %v80
  %v82 = vpop.xlane.xlu0 %81
  %v83 = vsel %vm40, %v22, inf
  %84 = vmin.xlane.f32.xlu0 %v83
  %v85 = vpop.xlane.xlu0 %84
  %v86 = vsel %vm40, %v23, inf
  %87 = vmin.xlane.f32.xlu0 %v86
  %v88 = vpop.xlane.xlu0 %87
  %v89 = vsel %vm40, %v24, inf
  %90 = vmin.xlane.f32.xlu0 %v89
  %v91 = vpop.xlane.xlu0 %90
  %v92 = vsel %vm40, %v25, inf
  %93 = vmin.xlane.f32.xlu0 %v92
  %v94 = vpop.xlane.xlu0 %93
  %v95 = vsel %vm40, %v26, inf
  %96 = vmin.xlane.f32.xlu0 %v95
  %v97 = vpop.xlane.xlu0 %96
  %v98 = vsel %vm40, %v27, inf
  %99 = vmin.xlane.f32.xlu0 %v98
  %v100 = vpop.xlane.xlu0 %99
  %v101 = vsel %vm40, %v28, inf
  %102 = vmin.xlane.f32.xlu0 %v101
  %v103 = vpop.xlane.xlu0 %102
  %v104 = vsel %vm40, %v29, inf
  %105 = vmin.xlane.f32.xlu0 %v104
  %v106 = vpop.xlane.xlu0 %105
  %v107 = vsel %vm40, %v30, inf
  %108 = vmin.xlane.f32.xlu0 %v107
  %v109 = vpop.xlane.xlu0 %108
  %v110 = vsel %vm40, %v31, inf
  %111 = vmin.xlane.f32.xlu0 %v110
  %v112 = vpop.xlane.xlu0 %111
  %v113 = vsel %vm40, %v32, inf
  %114 = vmin.xlane.f32.xlu0 %v113
  %v115 = vpop.xlane.xlu0 %114
  %v116 = vsel %vm40, %v33, inf
  %117 = vmin.xlane.f32.xlu0 %v116
  %v118 = vpop.xlane.xlu0 %117
  %v119 = vsel %vm40, %v34, inf
  %120 = vmin.xlane.f32.xlu0 %v119
  %v121 = vpop.xlane.xlu0 %120
  %v122 = vsel %vm40, %v35, inf
  %123 = vmin.xlane.f32.xlu0 %v122
  %v124 = vpop.xlane.xlu0 %123
  %v125 = vsel %vm40, %v36, inf
  %126 = vmin.xlane.f32.xlu0 %v125
  %v127 = vpop.xlane.xlu0 %126
  %v128 = vsel %vm40, %v37, inf
  %129 = vmin.xlane.f32.xlu0 %v128
  %v130 = vpop.xlane.xlu0 %129
  %v131 = vsel %vm40, %v38, inf
  %132 = vmin.xlane.f32.xlu0 %v131
  %v133 = vpop.xlane.xlu0 %132
  %v134 = vsel %vm40, %v39, inf
  %135 = vmin.xlane.f32.xlu0 %v134
  %v136 = vpop.xlane.xlu0 %135
  %v137 = vmul.f32 %v43, 0.95
  %v138 = vmul.f32 %v46, 0.95
  %v139 = vmul.f32 %v49, 0.95
  %v140 = vmul.f32 %v52, 0.95
  %v141 = vmul.f32 %v55, 0.95
  %v142 = vmul.f32 %v58, 0.95
  %v143 = vmul.f32 %v61, 0.95
  %v144 = vmul.f32 %v64, 0.95
  %v145 = vmul.f32 %v67, 0.95
  %v146 = vmul.f32 %v70, 0.95
  %v147 = vmul.f32 %v73, 0.95
  %v148 = vmul.f32 %v76, 0.95
  %v149 = vmul.f32 %v79, 0.95
  %v150 = vmul.f32 %v82, 0.95
  %v151 = vmul.f32 %v85, 0.95
  %v152 = vmul.f32 %v88, 0.95
  %v153 = vmul.f32 %v91, 0.95
  %v154 = vmul.f32 %v94, 0.95
  %v155 = vmul.f32 %v97, 0.95
  %v156 = vmul.f32 %v100, 0.95
  %v157 = vmul.f32 %v103, 0.95
  %v158 = vmul.f32 %v106, 0.95
  %v159 = vmul.f32 %v109, 0.95
  %v160 = vmul.f32 %v112, 0.95
  %v161 = vmul.f32 %v115, 0.95
  %v162 = vmul.f32 %v118, 0.95
  %v163 = vmul.f32 %v121, 0.95
  %v164 = vmul.f32 %v124, 0.95
  %v165 = vmul.f32 %v127, 0.95
  %v166 = vmul.f32 %v130, 0.95
  %v167 = vmul.f32 %v133, 0.95
  %v168 = vmul.f32 %v136, 0.95
  %v169 = vsel %vm40, %v8, -inf
  %170 = vmax.xlane.f32.xlu0 %v169
  %v171 = vpop.xlane.xlu0 %170
  %v172 = vsel %vm40, %v9, -inf
  %173 = vmax.xlane.f32.xlu0 %v172
  %v174 = vpop.xlane.xlu0 %173
  %v175 = vsel %vm40, %v10, -inf
  %176 = vmax.xlane.f32.xlu0 %v175
  %v177 = vpop.xlane.xlu0 %176
  %v178 = vsel %vm40, %v11, -inf
  %179 = vmax.xlane.f32.xlu0 %v178
  %v180 = vpop.xlane.xlu0 %179
  %v181 = vsel %vm40, %v12, -inf
  %182 = vmax.xlane.f32.xlu0 %v181
  %v183 = vpop.xlane.xlu0 %182
  %v184 = vsel %vm40, %v13, -inf
  %185 = vmax.xlane.f32.xlu0 %v184
  %v186 = vpop.xlane.xlu0 %185
  %v187 = vsel %vm40, %v14, -inf
  %188 = vmax.xlane.f32.xlu0 %v187
  %v189 = vpop.xlane.xlu0 %188
  %v190 = vsel %vm40, %v15, -inf
  %191 = vmax.xlane.f32.xlu0 %v190
  %v192 = vpop.xlane.xlu0 %191
  %v193 = vsel %vm40, %v16, -inf
  %194 = vmax.xlane.f32.xlu0 %v193
  %v195 = vpop.xlane.xlu0 %194
  %v196 = vsel %vm40, %v17, -inf
  %197 = vmax.xlane.f32.xlu0 %v196
  %v198 = vpop.xlane.xlu0 %197
  %v199 = vsel %vm40, %v18, -inf
  %200 = vmax.xlane.f32.xlu0 %v199
  %v201 = vpop.xlane.xlu0 %200
  %v202 = vsel %vm40, %v19, -inf
  %203 = vmax.xlane.f32.xlu0 %v202
  %v204 = vpop.xlane.xlu0 %203
  %v205 = vsel %vm40, %v20, -inf
  %206 = vmax.xlane.f32.xlu0 %v205
  %v207 = vpop.xlane.xlu0 %206
  %v208 = vsel %vm40, %v21, -inf
  %209 = vmax.xlane.f32.xlu0 %v208
  %v210 = vpop.xlane.xlu0 %209
  %v211 = vsel %vm40, %v22, -inf
  %212 = vmax.xlane.f32.xlu0 %v211
  %v213 = vpop.xlane.xlu0 %212
  %v214 = vsel %vm40, %v23, -inf
  %215 = vmax.xlane.f32.xlu0 %v214
  %v216 = vpop.xlane.xlu0 %215
  %v217 = vsel %vm40, %v24, -inf
  %218 = vmax.xlane.f32.xlu0 %v217
  %v219 = vpop.xlane.xlu0 %218
  %v220 = vsel %vm40, %v25, -inf
  %221 = vmax.xlane.f32.xlu0 %v220
  %v222 = vpop.xlane.xlu0 %221
  %v223 = vsel %vm40, %v26, -inf
  %224 = vmax.xlane.f32.xlu0 %v223
  %v225 = vpop.xlane.xlu0 %224
  %v226 = vsel %vm40, %v27, -inf
  %227 = vmax.xlane.f32.xlu0 %v226
  %v228 = vpop.xlane.xlu0 %227
  %v229 = vsel %vm40, %v28, -inf
  %230 = vmax.xlane.f32.xlu0 %v229
  %v231 = vpop.xlane.xlu0 %230
  %v232 = vsel %vm40, %v29, -inf
  %233 = vmax.xlane.f32.xlu0 %v232
  %v234 = vpop.xlane.xlu0 %233
  %v235 = vsel %vm40, %v30, -inf
  %236 = vmax.xlane.f32.xlu0 %v235
  %v237 = vpop.xlane.xlu0 %236
  %v238 = vsel %vm40, %v31, -inf
  %239 = vmax.xlane.f32.xlu0 %v238
  %v240 = vpop.xlane.xlu0 %239
  %v241 = vsel %vm40, %v32, -inf
  %242 = vmax.xlane.f32.xlu0 %v241
  %v243 = vpop.xlane.xlu0 %242
  %v244 = vsel %vm40, %v33, -inf
  %245 = vmax.xlane.f32.xlu0 %v244
  %v246 = vpop.xlane.xlu0 %245
  %v247 = vsel %vm40, %v34, -inf
  %248 = vmax.xlane.f32.xlu0 %v247
  %v249 = vpop.xlane.xlu0 %248
  %v250 = vsel %vm40, %v35, -inf
  %251 = vmax.xlane.f32.xlu0 %v250
  %v252 = vpop.xlane.xlu0 %251
  %v253 = vsel %vm40, %v36, -inf
  %254 = vmax.xlane.f32.xlu0 %v253
  %v255 = vpop.xlane.xlu0 %254
  %v256 = vsel %vm40, %v37, -inf
  %257 = vmax.xlane.f32.xlu0 %v256
  %v258 = vpop.xlane.xlu0 %257
  %v259 = vsel %vm40, %v38, -inf
  %260 = vmax.xlane.f32.xlu0 %v259
  %v261 = vpop.xlane.xlu0 %260
  %v262 = vsel %vm40, %v39, -inf
  %263 = vmax.xlane.f32.xlu0 %v262
  %v264 = vpop.xlane.xlu0 %263
  %v265 = vmul.f32 %v171, 0.95
  %v266 = vmul.f32 %v174, 0.95
  %v267 = vmul.f32 %v177, 0.95
  %v268 = vmul.f32 %v180, 0.95
  %v269 = vmul.f32 %v183, 0.95
  %v270 = vmul.f32 %v186, 0.95
  %v271 = vmul.f32 %v189, 0.95
  %v272 = vmul.f32 %v192, 0.95
  %v273 = vmul.f32 %v195, 0.95
  %v274 = vmul.f32 %v198, 0.95
  %v275 = vmul.f32 %v201, 0.95
  %v276 = vmul.f32 %v204, 0.95
  %v277 = vmul.f32 %v207, 0.95
  %v278 = vmul.f32 %v210, 0.95
  %v279 = vmul.f32 %v213, 0.95
  %v280 = vmul.f32 %v216, 0.95
  %v281 = vmul.f32 %v219, 0.95
  %v282 = vmul.f32 %v222, 0.95
  %v283 = vmul.f32 %v225, 0.95
  %v284 = vmul.f32 %v228, 0.95
  %v285 = vmul.f32 %v231, 0.95
  %v286 = vmul.f32 %v234, 0.95
  %v287 = vmul.f32 %v237, 0.95
  %v288 = vmul.f32 %v240, 0.95
  %v289 = vmul.f32 %v243, 0.95
  %v290 = vmul.f32 %v246, 0.95
  %v291 = vmul.f32 %v249, 0.95
  %v292 = vmul.f32 %v252, 0.95
  %v293 = vmul.f32 %v255, 0.95
  %v294 = vmul.f32 %v258, 0.95
  %v295 = vmul.f32 %v261, 0.95
  %v296 = vmul.f32 %v264, 0.95
  %v297 = vsub.f32 %v265, %v137
  %v298 = vsub.f32 %v266, %v138
  %v299 = vsub.f32 %v267, %v139
  %v300 = vsub.f32 %v268, %v140
  %v301 = vsub.f32 %v269, %v141
  %v302 = vsub.f32 %v270, %v142
  %v303 = vsub.f32 %v271, %v143
  %v304 = vsub.f32 %v272, %v144
  %v305 = vsub.f32 %v273, %v145
  %v306 = vsub.f32 %v274, %v146
  %v307 = vsub.f32 %v275, %v147
  %v308 = vsub.f32 %v276, %v148
  %v309 = vsub.f32 %v277, %v149
  %v310 = vsub.f32 %v278, %v150
  %v311 = vsub.f32 %v279, %v151
  %v312 = vsub.f32 %v280, %v152
  %v313 = vsub.f32 %v281, %v153
  %v314 = vsub.f32 %v282, %v154
  %v315 = vsub.f32 %v283, %v155
  %v316 = vsub.f32 %v284, %v156
  %v317 = vsub.f32 %v285, %v157
  %v318 = vsub.f32 %v286, %v158
  %v319 = vsub.f32 %v287, %v159
  %v320 = vsub.f32 %v288, %v160
  %v321 = vsub.f32 %v289, %v161
  %v322 = vsub.f32 %v290, %v162
  %v323 = vsub.f32 %v291, %v163
  %v324 = vsub.f32 %v292, %v164
  %v325 = vsub.f32 %v293, %v165
  %v326 = vsub.f32 %v294, %v166
  %v327 = vsub.f32 %v295, %v167
  %v328 = vsub.f32 %v296, %v168
  %v329 = vrcp.pop 15.0
  %v330 = vmul.f32 15.0, %v329
  %v331 = vsub.f32 1.0, %v330
  %v332 = vmul.f32 %v329, %v331
  %v333 = vadd.f32 %v329, %v332
  %vm334 = vweird.f32 %v329
  %v335 = vsel %vm334, %v329, %v333
  %v336 = vmul.f32 %v297, %v335
  %v337 = vmul.f32 %v298, %v335
  %v338 = vmul.f32 %v299, %v335
  %v339 = vmul.f32 %v300, %v335
  %v340 = vmul.f32 %v301, %v335
  %v341 = vmul.f32 %v302, %v335
  %v342 = vmul.f32 %v303, %v335
  %v343 = vmul.f32 %v304, %v335
  %v344 = vmul.f32 %v305, %v335
  %v345 = vmul.f32 %v306, %v335
  %v346 = vmul.f32 %v307, %v335
  %v347 = vmul.f32 %v308, %v335
  %v348 = vmul.f32 %v309, %v335
  %v349 = vmul.f32 %v310, %v335
  %v350 = vmul.f32 %v311, %v335
  %v351 = vmul.f32 %v312, %v335
  %v352 = vmul.f32 %v313, %v335
  %v353 = vmul.f32 %v314, %v335
  %v354 = vmul.f32 %v315, %v335
  %v355 = vmul.f32 %v316, %v335
  %v356 = vmul.f32 %v317, %v335
  %v357 = vmul.f32 %v318, %v335
  %v358 = vmul.f32 %v319, %v335
  %v359 = vmul.f32 %v320, %v335
  %v360 = vmul.f32 %v321, %v335
  %v361 = vmul.f32 %v322, %v335
  %v362 = vmul.f32 %v323, %v335
  %v363 = vmul.f32 %v324, %v335
  %v364 = vmul.f32 %v325, %v335
  %v365 = vmul.f32 %v326, %v335
  %v366 = vmul.f32 %v327, %v335
  %v367 = vmul.f32 %v328, %v335
  %v368 = vmax.f32 %v336, 1e-05
  %v369 = vmax.f32 %v337, 1e-05
  %v370 = vmax.f32 %v338, 1e-05
  %v371 = vmax.f32 %v339, 1e-05
  %v372 = vmax.f32 %v340, 1e-05
  %v373 = vmax.f32 %v341, 1e-05
  %v374 = vmax.f32 %v342, 1e-05
  %v375 = vmax.f32 %v343, 1e-05
  %v376 = vmax.f32 %v344, 1e-05
  %v377 = vmax.f32 %v345, 1e-05
  %v378 = vmax.f32 %v346, 1e-05
  %v379 = vmax.f32 %v347, 1e-05
  %v380 = vmax.f32 %v348, 1e-05
  %v381 = vmax.f32 %v349, 1e-05
  %v382 = vmax.f32 %v350, 1e-05
  %v383 = vmax.f32 %v351, 1e-05
  %v384 = vmax.f32 %v352, 1e-05
  %v385 = vmax.f32 %v353, 1e-05
  %v386 = vmax.f32 %v354, 1e-05
  %v387 = vmax.f32 %v355, 1e-05
  %v388 = vmax.f32 %v356, 1e-05
  %v389 = vmax.f32 %v357, 1e-05
  %v390 = vmax.f32 %v358, 1e-05
  %v391 = vmax.f32 %v359, 1e-05
  %v392 = vmax.f32 %v360, 1e-05
  %v393 = vmax.f32 %v361, 1e-05
  %v394 = vmax.f32 %v362, 1e-05
  %v395 = vmax.f32 %v363, 1e-05
  %v396 = vmax.f32 %v364, 1e-05
  %v397 = vmax.f32 %v365, 1e-05
  %v398 = vmax.f32 %v366, 1e-05
  %v399 = vmax.f32 %v367, 1e-05
  %v400 = vrcp.pop %v368
  %v401 = vmul.f32 %v368, %v400
  %v402 = vsub.f32 1.0, %v401
  %v403 = vmul.f32 %v400, %v402
  %v404 = vadd.f32 %v400, %v403
  %vm405 = vweird.f32 %v368
  %vm406 = vweird.f32 %v400
  %vm407 = vmor %vm405, %vm406
  %v408 = vsel %vm407, %v400, %v404
  %v409 = vand.u32 2147483647, %v368
  %vm410 = vcmp.eq.f32.partialorder %v409, 8.507059e+37
  %v411 = vand.u32 %v368, 2147483648
  %v412 = vor.u32 1.1754944e-38, %v411
  %v413 = vsel %vm410, %v412, %v408
  %v414 = vmul.f32 1.0, %v413
  %v415 = vrcp.pop %v369
  %v416 = vmul.f32 %v369, %v415
  %v417 = vsub.f32 1.0, %v416
  %v418 = vmul.f32 %v415, %v417
  %v419 = vadd.f32 %v415, %v418
  %vm420 = vweird.f32 %v369
  %vm421 = vweird.f32 %v415
  %vm422 = vmor %vm420, %vm421
  %v423 = vsel %vm422, %v415, %v419
  %v424 = vand.u32 2147483647, %v369
  %vm425 = vcmp.eq.f32.partialorder %v424, 8.507059e+37
  %v426 = vand.u32 %v369, 2147483648
  %v427 = vor.u32 1.1754944e-38, %v426
  %v428 = vsel %vm425, %v427, %v423
  %v429 = vmul.f32 1.0, %v428
  %v430 = vrcp.pop %v370
  %v431 = vmul.f32 %v370, %v430
  %v432 = vsub.f32 1.0, %v431
  %v433 = vmul.f32 %v430, %v432
  %v434 = vadd.f32 %v430, %v433
  %vm435 = vweird.f32 %v370
  %vm436 = vweird.f32 %v430
  %vm437 = vmor %vm435, %vm436
  %v438 = vsel %vm437, %v430, %v434
  %v439 = vand.u32 2147483647, %v370
  %vm440 = vcmp.eq.f32.partialorder %v439, 8.507059e+37
  %v441 = vand.u32 %v370, 2147483648
  %v442 = vor.u32 1.1754944e-38, %v441
  %v443 = vsel %vm440, %v442, %v438
  %v444 = vmul.f32 1.0, %v443
  %v445 = vrcp.pop %v371
  %v446 = vmul.f32 %v371, %v445
  %v447 = vsub.f32 1.0, %v446
  %v448 = vmul.f32 %v445, %v447
  %v449 = vadd.f32 %v445, %v448
  %vm450 = vweird.f32 %v371
  %vm451 = vweird.f32 %v445
  %vm452 = vmor %vm450, %vm451
  %v453 = vsel %vm452, %v445, %v449
  %v454 = vand.u32 2147483647, %v371
  %vm455 = vcmp.eq.f32.partialorder %v454, 8.507059e+37
  %v456 = vand.u32 %v371, 2147483648
  %v457 = vor.u32 1.1754944e-38, %v456
  %v458 = vsel %vm455, %v457, %v453
  %v459 = vmul.f32 1.0, %v458
  %v460 = vrcp.pop %v372
  %v461 = vmul.f32 %v372, %v460
  %v462 = vsub.f32 1.0, %v461
  %v463 = vmul.f32 %v460, %v462
  %v464 = vadd.f32 %v460, %v463
  %vm465 = vweird.f32 %v372
  %vm466 = vweird.f32 %v460
  %vm467 = vmor %vm465, %vm466
  %v468 = vsel %vm467, %v460, %v464
  %v469 = vand.u32 2147483647, %v372
  %vm470 = vcmp.eq.f32.partialorder %v469, 8.507059e+37
  %v471 = vand.u32 %v372, 2147483648
  %v472 = vor.u32 1.1754944e-38, %v471
  %v473 = vsel %vm470, %v472, %v468
  %v474 = vmul.f32 1.0, %v473
  %v475 = vrcp.pop %v373
  %v476 = vmul.f32 %v373, %v475
  %v477 = vsub.f32 1.0, %v476
  %v478 = vmul.f32 %v475, %v477
  %v479 = vadd.f32 %v475, %v478
  %vm480 = vweird.f32 %v373
  %vm481 = vweird.f32 %v475
  %vm482 = vmor %vm480, %vm481
  %v483 = vsel %vm482, %v475, %v479
  %v484 = vand.u32 2147483647, %v373
  %vm485 = vcmp.eq.f32.partialorder %v484, 8.507059e+37
  %v486 = vand.u32 %v373, 2147483648
  %v487 = vor.u32 1.1754944e-38, %v486
  %v488 = vsel %vm485, %v487, %v483
  %v489 = vmul.f32 1.0, %v488
  %v490 = vrcp.pop %v374
  %v491 = vmul.f32 %v374, %v490
  %v492 = vsub.f32 1.0, %v491
  %v493 = vmul.f32 %v490, %v492
  %v494 = vadd.f32 %v490, %v493
  %vm495 = vweird.f32 %v374
  %vm496 = vweird.f32 %v490
  %vm497 = vmor %vm495, %vm496
  %v498 = vsel %vm497, %v490, %v494
  %v499 = vand.u32 2147483647, %v374
  %vm500 = vcmp.eq.f32.partialorder %v499, 8.507059e+37
  %v501 = vand.u32 %v374, 2147483648
  %v502 = vor.u32 1.1754944e-38, %v501
  %v503 = vsel %vm500, %v502, %v498
  %v504 = vmul.f32 1.0, %v503
  %v505 = vrcp.pop %v375
  %v506 = vmul.f32 %v375, %v505
  %v507 = vsub.f32 1.0, %v506
  %v508 = vmul.f32 %v505, %v507
  %v509 = vadd.f32 %v505, %v508
  %vm510 = vweird.f32 %v375
  %vm511 = vweird.f32 %v505
  %vm512 = vmor %vm510, %vm511
  %v513 = vsel %vm512, %v505, %v509
  %v514 = vand.u32 2147483647, %v375
  %vm515 = vcmp.eq.f32.partialorder %v514, 8.507059e+37
  %v516 = vand.u32 %v375, 2147483648
  %v517 = vor.u32 1.1754944e-38, %v516
  %v518 = vsel %vm515, %v517, %v513
  %v519 = vmul.f32 1.0, %v518
  %v520 = vrcp.pop %v376
  %v521 = vmul.f32 %v376, %v520
  %v522 = vsub.f32 1.0, %v521
  %v523 = vmul.f32 %v520, %v522
  %v524 = vadd.f32 %v520, %v523
  %vm525 = vweird.f32 %v376
  %vm526 = vweird.f32 %v520
  %vm527 = vmor %vm525, %vm526
  %v528 = vsel %vm527, %v520, %v524
  %v529 = vand.u32 2147483647, %v376
  %vm530 = vcmp.eq.f32.partialorder %v529, 8.507059e+37
  %v531 = vand.u32 %v376, 2147483648
  %v532 = vor.u32 1.1754944e-38, %v531
  %v533 = vsel %vm530, %v532, %v528
  %v534 = vmul.f32 1.0, %v533
  %v535 = vrcp.pop %v377
  %v536 = vmul.f32 %v377, %v535
  %v537 = vsub.f32 1.0, %v536
  %v538 = vmul.f32 %v535, %v537
  %v539 = vadd.f32 %v535, %v538
  %vm540 = vweird.f32 %v377
  %vm541 = vweird.f32 %v535
  %vm542 = vmor %vm540, %vm541
  %v543 = vsel %vm542, %v535, %v539
  %v544 = vand.u32 2147483647, %v377
  %vm545 = vcmp.eq.f32.partialorder %v544, 8.507059e+37
  %v546 = vand.u32 %v377, 2147483648
  %v547 = vor.u32 1.1754944e-38, %v546
  %v548 = vsel %vm545, %v547, %v543
  %v549 = vmul.f32 1.0, %v548
  %v550 = vrcp.pop %v378
  %v551 = vmul.f32 %v378, %v550
  %v552 = vsub.f32 1.0, %v551
  %v553 = vmul.f32 %v550, %v552
  %v554 = vadd.f32 %v550, %v553
  %vm555 = vweird.f32 %v378
  %vm556 = vweird.f32 %v550
  %vm557 = vmor %vm555, %vm556
  %v558 = vsel %vm557, %v550, %v554
  %v559 = vand.u32 2147483647, %v378
  %vm560 = vcmp.eq.f32.partialorder %v559, 8.507059e+37
  %v561 = vand.u32 %v378, 2147483648
  %v562 = vor.u32 1.1754944e-38, %v561
  %v563 = vsel %vm560, %v562, %v558
  %v564 = vmul.f32 1.0, %v563
  %v565 = vrcp.pop %v379
  %v566 = vmul.f32 %v379, %v565
  %v567 = vsub.f32 1.0, %v566
  %v568 = vmul.f32 %v565, %v567
  %v569 = vadd.f32 %v565, %v568
  %vm570 = vweird.f32 %v379
  %vm571 = vweird.f32 %v565
  %vm572 = vmor %vm570, %vm571
  %v573 = vsel %vm572, %v565, %v569
  %v574 = vand.u32 2147483647, %v379
  %vm575 = vcmp.eq.f32.partialorder %v574, 8.507059e+37
  %v576 = vand.u32 %v379, 2147483648
  %v577 = vor.u32 1.1754944e-38, %v576
  %v578 = vsel %vm575, %v577, %v573
  %v579 = vmul.f32 1.0, %v578
  %v580 = vrcp.pop %v380
  %v581 = vmul.f32 %v380, %v580
  %v582 = vsub.f32 1.0, %v581
  %v583 = vmul.f32 %v580, %v582
  %v584 = vadd.f32 %v580, %v583
  %vm585 = vweird.f32 %v380
  %vm586 = vweird.f32 %v580
  %vm587 = vmor %vm585, %vm586
  %v588 = vsel %vm587, %v580, %v584
  %v589 = vand.u32 2147483647, %v380
  %vm590 = vcmp.eq.f32.partialorder %v589, 8.507059e+37
  %v591 = vand.u32 %v380, 2147483648
  %v592 = vor.u32 1.1754944e-38, %v591
  %v593 = vsel %vm590, %v592, %v588
  %v594 = vmul.f32 1.0, %v593
  %v595 = vrcp.pop %v381
  %v596 = vmul.f32 %v381, %v595
  %v597 = vsub.f32 1.0, %v596
  %v598 = vmul.f32 %v595, %v597
  %v599 = vadd.f32 %v595, %v598
  %vm600 = vweird.f32 %v381
  %vm601 = vweird.f32 %v595
  %vm602 = vmor %vm600, %vm601
  %v603 = vsel %vm602, %v595, %v599
  %v604 = vand.u32 2147483647, %v381
  %vm605 = vcmp.eq.f32.partialorder %v604, 8.507059e+37
  %v606 = vand.u32 %v381, 2147483648
  %v607 = vor.u32 1.1754944e-38, %v606
  %v608 = vsel %vm605, %v607, %v603
  %v609 = vmul.f32 1.0, %v608
  %v610 = vrcp.pop %v382
  %v611 = vmul.f32 %v382, %v610
  %v612 = vsub.f32 1.0, %v611
  %v613 = vmul.f32 %v610, %v612
  %v614 = vadd.f32 %v610, %v613
  %vm615 = vweird.f32 %v382
  %vm616 = vweird.f32 %v610
  %vm617 = vmor %vm615, %vm616
  %v618 = vsel %vm617, %v610, %v614
  %v619 = vand.u32 2147483647, %v382
  %vm620 = vcmp.eq.f32.partialorder %v619, 8.507059e+37
  %v621 = vand.u32 %v382, 2147483648
  %v622 = vor.u32 1.1754944e-38, %v621
  %v623 = vsel %vm620, %v622, %v618
  %v624 = vmul.f32 1.0, %v623
  %v625 = vrcp.pop %v383
  %v626 = vmul.f32 %v383, %v625
  %v627 = vsub.f32 1.0, %v626
  %v628 = vmul.f32 %v625, %v627
  %v629 = vadd.f32 %v625, %v628
  %vm630 = vweird.f32 %v383
  %vm631 = vweird.f32 %v625
  %vm632 = vmor %vm630, %vm631
  %v633 = vsel %vm632, %v625, %v629
  %v634 = vand.u32 2147483647, %v383
  %vm635 = vcmp.eq.f32.partialorder %v634, 8.507059e+37
  %v636 = vand.u32 %v383, 2147483648
  %v637 = vor.u32 1.1754944e-38, %v636
  %v638 = vsel %vm635, %v637, %v633
  %v639 = vmul.f32 1.0, %v638
  %v640 = vrcp.pop %v384
  %v641 = vmul.f32 %v384, %v640
  %v642 = vsub.f32 1.0, %v641
  %v643 = vmul.f32 %v640, %v642
  %v644 = vadd.f32 %v640, %v643
  %vm645 = vweird.f32 %v384
  %vm646 = vweird.f32 %v640
  %vm647 = vmor %vm645, %vm646
  %v648 = vsel %vm647, %v640, %v644
  %v649 = vand.u32 2147483647, %v384
  %vm650 = vcmp.eq.f32.partialorder %v649, 8.507059e+37
  %v651 = vand.u32 %v384, 2147483648
  %v652 = vor.u32 1.1754944e-38, %v651
  %v653 = vsel %vm650, %v652, %v648
  %v654 = vmul.f32 1.0, %v653
  %v655 = vrcp.pop %v385
  %v656 = vmul.f32 %v385, %v655
  %v657 = vsub.f32 1.0, %v656
  %v658 = vmul.f32 %v655, %v657
  %v659 = vadd.f32 %v655, %v658
  %vm660 = vweird.f32 %v385
  %vm661 = vweird.f32 %v655
  %vm662 = vmor %vm660, %vm661
  %v663 = vsel %vm662, %v655, %v659
  %v664 = vand.u32 2147483647, %v385
  %vm665 = vcmp.eq.f32.partialorder %v664, 8.507059e+37
  %v666 = vand.u32 %v385, 2147483648
  %v667 = vor.u32 1.1754944e-38, %v666
  %v668 = vsel %vm665, %v667, %v663
  %v669 = vmul.f32 1.0, %v668
  %v670 = vrcp.pop %v386
  %v671 = vmul.f32 %v386, %v670
  %v672 = vsub.f32 1.0, %v671
  %v673 = vmul.f32 %v670, %v672
  %v674 = vadd.f32 %v670, %v673
  %vm675 = vweird.f32 %v386
  %vm676 = vweird.f32 %v670
  %vm677 = vmor %vm675, %vm676
  %v678 = vsel %vm677, %v670, %v674
  %v679 = vand.u32 2147483647, %v386
  %vm680 = vcmp.eq.f32.partialorder %v679, 8.507059e+37
  %v681 = vand.u32 %v386, 2147483648
  %v682 = vor.u32 1.1754944e-38, %v681
  %v683 = vsel %vm680, %v682, %v678
  %v684 = vmul.f32 1.0, %v683
  %v685 = vrcp.pop %v387
  %v686 = vmul.f32 %v387, %v685
  %v687 = vsub.f32 1.0, %v686
  %v688 = vmul.f32 %v685, %v687
  %v689 = vadd.f32 %v685, %v688
  %vm690 = vweird.f32 %v387
  %vm691 = vweird.f32 %v685
  %vm692 = vmor %vm690, %vm691
  %v693 = vsel %vm692, %v685, %v689
  %v694 = vand.u32 2147483647, %v387
  %vm695 = vcmp.eq.f32.partialorder %v694, 8.507059e+37
  %v696 = vand.u32 %v387, 2147483648
  %v697 = vor.u32 1.1754944e-38, %v696
  %v698 = vsel %vm695, %v697, %v693
  %v699 = vmul.f32 1.0, %v698
  %v700 = vrcp.pop %v388
  %v701 = vmul.f32 %v388, %v700
  %v702 = vsub.f32 1.0, %v701
  %v703 = vmul.f32 %v700, %v702
  %v704 = vadd.f32 %v700, %v703
  %vm705 = vweird.f32 %v388
  %vm706 = vweird.f32 %v700
  %vm707 = vmor %vm705, %vm706
  %v708 = vsel %vm707, %v700, %v704
  %v709 = vand.u32 2147483647, %v388
  %vm710 = vcmp.eq.f32.partialorder %v709, 8.507059e+37
  %v711 = vand.u32 %v388, 2147483648
  %v712 = vor.u32 1.1754944e-38, %v711
  %v713 = vsel %vm710, %v712, %v708
  %v714 = vmul.f32 1.0, %v713
  %v715 = vrcp.pop %v389
  %v716 = vmul.f32 %v389, %v715
  %v717 = vsub.f32 1.0, %v716
  %v718 = vmul.f32 %v715, %v717
  %v719 = vadd.f32 %v715, %v718
  %vm720 = vweird.f32 %v389
  %vm721 = vweird.f32 %v715
  %vm722 = vmor %vm720, %vm721
  %v723 = vsel %vm722, %v715, %v719
  %v724 = vand.u32 2147483647, %v389
  %vm725 = vcmp.eq.f32.partialorder %v724, 8.507059e+37
  %v726 = vand.u32 %v389, 2147483648
  %v727 = vor.u32 1.1754944e-38, %v726
  %v728 = vsel %vm725, %v727, %v723
  %v729 = vmul.f32 1.0, %v728
  %v730 = vrcp.pop %v390
  %v731 = vmul.f32 %v390, %v730
  %v732 = vsub.f32 1.0, %v731
  %v733 = vmul.f32 %v730, %v732
  %v734 = vadd.f32 %v730, %v733
  %vm735 = vweird.f32 %v390
  %vm736 = vweird.f32 %v730
  %vm737 = vmor %vm735, %vm736
  %v738 = vsel %vm737, %v730, %v734
  %v739 = vand.u32 2147483647, %v390
  %vm740 = vcmp.eq.f32.partialorder %v739, 8.507059e+37
  %v741 = vand.u32 %v390, 2147483648
  %v742 = vor.u32 1.1754944e-38, %v741
  %v743 = vsel %vm740, %v742, %v738
  %v744 = vmul.f32 1.0, %v743
  %v745 = vrcp.pop %v391
  %v746 = vmul.f32 %v391, %v745
  %v747 = vsub.f32 1.0, %v746
  %v748 = vmul.f32 %v745, %v747
  %v749 = vadd.f32 %v745, %v748
  %vm750 = vweird.f32 %v391
  %vm751 = vweird.f32 %v745
  %vm752 = vmor %vm750, %vm751
  %v753 = vsel %vm752, %v745, %v749
  %v754 = vand.u32 2147483647, %v391
  %vm755 = vcmp.eq.f32.partialorder %v754, 8.507059e+37
  %v756 = vand.u32 %v391, 2147483648
  %v757 = vor.u32 1.1754944e-38, %v756
  %v758 = vsel %vm755, %v757, %v753
  %v759 = vmul.f32 1.0, %v758
  %v760 = vrcp.pop %v392
  %v761 = vmul.f32 %v392, %v760
  %v762 = vsub.f32 1.0, %v761
  %v763 = vmul.f32 %v760, %v762
  %v764 = vadd.f32 %v760, %v763
  %vm765 = vweird.f32 %v392
  %vm766 = vweird.f32 %v760
  %vm767 = vmor %vm765, %vm766
  %v768 = vsel %vm767, %v760, %v764
  %v769 = vand.u32 2147483647, %v392
  %vm770 = vcmp.eq.f32.partialorder %v769, 8.507059e+37
  %v771 = vand.u32 %v392, 2147483648
  %v772 = vor.u32 1.1754944e-38, %v771
  %v773 = vsel %vm770, %v772, %v768
  %v774 = vmul.f32 1.0, %v773
  %v775 = vrcp.pop %v393
  %v776 = vmul.f32 %v393, %v775
  %v777 = vsub.f32 1.0, %v776
  %v778 = vmul.f32 %v775, %v777
  %v779 = vadd.f32 %v775, %v778
  %vm780 = vweird.f32 %v393
  %vm781 = vweird.f32 %v775
  %vm782 = vmor %vm780, %vm781
  %v783 = vsel %vm782, %v775, %v779
  %v784 = vand.u32 2147483647, %v393
  %vm785 = vcmp.eq.f32.partialorder %v784, 8.507059e+37
  %v786 = vand.u32 %v393, 2147483648
  %v787 = vor.u32 1.1754944e-38, %v786
  %v788 = vsel %vm785, %v787, %v783
  %v789 = vmul.f32 1.0, %v788
  %v790 = vrcp.pop %v394
  %v791 = vmul.f32 %v394, %v790
  %v792 = vsub.f32 1.0, %v791
  %v793 = vmul.f32 %v790, %v792
  %v794 = vadd.f32 %v790, %v793
  %vm795 = vweird.f32 %v394
  %vm796 = vweird.f32 %v790
  %vm797 = vmor %vm795, %vm796
  %v798 = vsel %vm797, %v790, %v794
  %v799 = vand.u32 2147483647, %v394
  %vm800 = vcmp.eq.f32.partialorder %v799, 8.507059e+37
  %v801 = vand.u32 %v394, 2147483648
  %v802 = vor.u32 1.1754944e-38, %v801
  %v803 = vsel %vm800, %v802, %v798
  %v804 = vmul.f32 1.0, %v803
  %v805 = vrcp.pop %v395
  %v806 = vmul.f32 %v395, %v805
  %v807 = vsub.f32 1.0, %v806
  %v808 = vmul.f32 %v805, %v807
  %v809 = vadd.f32 %v805, %v808
  %vm810 = vweird.f32 %v395
  %vm811 = vweird.f32 %v805
  %vm812 = vmor %vm810, %vm811
  %v813 = vsel %vm812, %v805, %v809
  %v814 = vand.u32 2147483647, %v395
  %vm815 = vcmp.eq.f32.partialorder %v814, 8.507059e+37
  %v816 = vand.u32 %v395, 2147483648
  %v817 = vor.u32 1.1754944e-38, %v816
  %v818 = vsel %vm815, %v817, %v813
  %v819 = vmul.f32 1.0, %v818
  %v820 = vrcp.pop %v396
  %v821 = vmul.f32 %v396, %v820
  %v822 = vsub.f32 1.0, %v821
  %v823 = vmul.f32 %v820, %v822
  %v824 = vadd.f32 %v820, %v823
  %vm825 = vweird.f32 %v396
  %vm826 = vweird.f32 %v820
  %vm827 = vmor %vm825, %vm826
  %v828 = vsel %vm827, %v820, %v824
  %v829 = vand.u32 2147483647, %v396
  %vm830 = vcmp.eq.f32.partialorder %v829, 8.507059e+37
  %v831 = vand.u32 %v396, 2147483648
  %v832 = vor.u32 1.1754944e-38, %v831
  %v833 = vsel %vm830, %v832, %v828
  %v834 = vmul.f32 1.0, %v833
  %v835 = vrcp.pop %v397
  %v836 = vmul.f32 %v397, %v835
  %v837 = vsub.f32 1.0, %v836
  %v838 = vmul.f32 %v835, %v837
  %v839 = vadd.f32 %v835, %v838
  %vm840 = vweird.f32 %v397
  %vm841 = vweird.f32 %v835
  %vm842 = vmor %vm840, %vm841
  %v843 = vsel %vm842, %v835, %v839
  %v844 = vand.u32 2147483647, %v397
  %vm845 = vcmp.eq.f32.partialorder %v844, 8.507059e+37
  %v846 = vand.u32 %v397, 2147483648
  %v847 = vor.u32 1.1754944e-38, %v846
  %v848 = vsel %vm845, %v847, %v843
  %v849 = vmul.f32 1.0, %v848
  %v850 = vrcp.pop %v398
  %v851 = vmul.f32 %v398, %v850
  %v852 = vsub.f32 1.0, %v851
  %v853 = vmul.f32 %v850, %v852
  %v854 = vadd.f32 %v850, %v853
  %vm855 = vweird.f32 %v398
  %vm856 = vweird.f32 %v850
  %vm857 = vmor %vm855, %vm856
  %v858 = vsel %vm857, %v850, %v854
  %v859 = vand.u32 2147483647, %v398
  %vm860 = vcmp.eq.f32.partialorder %v859, 8.507059e+37
  %v861 = vand.u32 %v398, 2147483648
  %v862 = vor.u32 1.1754944e-38, %v861
  %v863 = vsel %vm860, %v862, %v858
  %v864 = vmul.f32 1.0, %v863
  %v865 = vrcp.pop %v399
  %v866 = vmul.f32 %v399, %v865
  %v867 = vsub.f32 1.0, %v866
  %v868 = vmul.f32 %v865, %v867
  %v869 = vadd.f32 %v865, %v868
  %vm870 = vweird.f32 %v399
  %vm871 = vweird.f32 %v865
  %vm872 = vmor %vm870, %vm871
  %v873 = vsel %vm872, %v865, %v869
  %v874 = vand.u32 2147483647, %v399
  %vm875 = vcmp.eq.f32.partialorder %v874, 8.507059e+37
  %v876 = vand.u32 %v399, 2147483648
  %v877 = vor.u32 1.1754944e-38, %v876
  %v878 = vsel %vm875, %v877, %v873
  %v879 = vmul.f32 1.0, %v878
  %v880 = vsub.f32 %v8, %v137
  %v881 = vsub.f32 %v9, %v138
  %v882 = vsub.f32 %v10, %v139
  %v883 = vsub.f32 %v11, %v140
  %v884 = vsub.f32 %v12, %v141
  %v885 = vsub.f32 %v13, %v142
  %v886 = vsub.f32 %v14, %v143
  %v887 = vsub.f32 %v15, %v144
  %v888 = vsub.f32 %v16, %v145
  %v889 = vsub.f32 %v17, %v146
  %v890 = vsub.f32 %v18, %v147
  %v891 = vsub.f32 %v19, %v148
  %v892 = vsub.f32 %v20, %v149
  %v893 = vsub.f32 %v21, %v150
  %v894 = vsub.f32 %v22, %v151
  %v895 = vsub.f32 %v23, %v152
  %v896 = vsub.f32 %v24, %v153
  %v897 = vsub.f32 %v25, %v154
  %v898 = vsub.f32 %v26, %v155
  %v899 = vsub.f32 %v27, %v156
  %v900 = vsub.f32 %v28, %v157
  %v901 = vsub.f32 %v29, %v158
  %v902 = vsub.f32 %v30, %v159
  %v903 = vsub.f32 %v31, %v160
  %v904 = vsub.f32 %v32, %v161
  %v905 = vsub.f32 %v33, %v162
  %v906 = vsub.f32 %v34, %v163
  %v907 = vsub.f32 %v35, %v164
  %v908 = vsub.f32 %v36, %v165
  %v909 = vsub.f32 %v37, %v166
  %v910 = vsub.f32 %v38, %v167
  %v911 = vsub.f32 %v39, %v168
  %v912 = vmul.f32 %v880, %v414
  %v913 = vmul.f32 %v881, %v429
  %v914 = vmul.f32 %v882, %v444
  %v915 = vmul.f32 %v883, %v459
  %v916 = vmul.f32 %v884, %v474
  %v917 = vmul.f32 %v885, %v489
  %v918 = vmul.f32 %v886, %v504
  %v919 = vmul.f32 %v887, %v519
  %v920 = vmul.f32 %v888, %v534
  %v921 = vmul.f32 %v889, %v549
  %v922 = vmul.f32 %v890, %v564
  %v923 = vmul.f32 %v891, %v579
  %v924 = vmul.f32 %v892, %v594
  %v925 = vmul.f32 %v893, %v609
  %v926 = vmul.f32 %v894, %v624
  %v927 = vmul.f32 %v895, %v639
  %v928 = vmul.f32 %v896, %v654
  %v929 = vmul.f32 %v897, %v669
  %v930 = vmul.f32 %v898, %v684
  %v931 = vmul.f32 %v899, %v699
  %v932 = vmul.f32 %v900, %v714
  %v933 = vmul.f32 %v901, %v729
  %v934 = vmul.f32 %v902, %v744
  %v935 = vmul.f32 %v903, %v759
  %v936 = vmul.f32 %v904, %v774
  %v937 = vmul.f32 %v905, %v789
  %v938 = vmul.f32 %v906, %v804
  %v939 = vmul.f32 %v907, %v819
  %v940 = vmul.f32 %v908, %v834
  %v941 = vmul.f32 %v909, %v849
  %v942 = vmul.f32 %v910, %v864
  %v943 = vmul.f32 %v911, %v879
  %v944 = vmax.f32 %v912, 0.0
  %v945 = vmax.f32 %v913, 0.0
  %v946 = vmax.f32 %v914, 0.0
  %v947 = vmax.f32 %v915, 0.0
  %v948 = vmax.f32 %v916, 0.0
  %v949 = vmax.f32 %v917, 0.0
  %v950 = vmax.f32 %v918, 0.0
  %v951 = vmax.f32 %v919, 0.0
  %v952 = vmax.f32 %v920, 0.0
  %v953 = vmax.f32 %v921, 0.0
  %v954 = vmax.f32 %v922, 0.0
  %v955 = vmax.f32 %v923, 0.0
  %v956 = vmax.f32 %v924, 0.0
  %v957 = vmax.f32 %v925, 0.0
  %v958 = vmax.f32 %v926, 0.0
  %v959 = vmax.f32 %v927, 0.0
  %v960 = vmax.f32 %v928, 0.0
  %v961 = vmax.f32 %v929, 0.0
  %v962 = vmax.f32 %v930, 0.0
  %v963 = vmax.f32 %v931, 0.0
  %v964 = vmax.f32 %v932, 0.0
  %v965 = vmax.f32 %v933, 0.0
  %v966 = vmax.f32 %v934, 0.0
  %v967 = vmax.f32 %v935, 0.0
  %v968 = vmax.f32 %v936, 0.0
  %v969 = vmax.f32 %v937, 0.0
  %v970 = vmax.f32 %v938, 0.0
  %v971 = vmax.f32 %v939, 0.0
  %v972 = vmax.f32 %v940, 0.0
  %v973 = vmax.f32 %v941, 0.0
  %v974 = vmax.f32 %v942, 0.0
  %v975 = vmax.f32 %v943, 0.0
  %v976 = vmin.f32 %v944, 15.0
  %v977 = vmin.f32 %v945, 15.0
  %v978 = vmin.f32 %v946, 15.0
  %v979 = vmin.f32 %v947, 15.0
  %v980 = vmin.f32 %v948, 15.0
  %v981 = vmin.f32 %v949, 15.0
  %v982 = vmin.f32 %v950, 15.0
  %v983 = vmin.f32 %v951, 15.0
  %v984 = vmin.f32 %v952, 15.0
  %v985 = vmin.f32 %v953, 15.0
  %v986 = vmin.f32 %v954, 15.0
  %v987 = vmin.f32 %v955, 15.0
  %v988 = vmin.f32 %v956, 15.0
  %v989 = vmin.f32 %v957, 15.0
  %v990 = vmin.f32 %v958, 15.0
  %v991 = vmin.f32 %v959, 15.0
  %v992 = vmin.f32 %v960, 15.0
  %v993 = vmin.f32 %v961, 15.0
  %v994 = vmin.f32 %v962, 15.0
  %v995 = vmin.f32 %v963, 15.0
  %v996 = vmin.f32 %v964, 15.0
  %v997 = vmin.f32 %v965, 15.0
  %v998 = vmin.f32 %v966, 15.0
  %v999 = vmin.f32 %v967, 15.0
  %v1000 = vmin.f32 %v968, 15.0
  %v1001 = vmin.f32 %v969, 15.0
  %v1002 = vmin.f32 %v970, 15.0
  %v1003 = vmin.f32 %v971, 15.0
  %v1004 = vmin.f32 %v972, 15.0
  %v1005 = vmin.f32 %v973, 15.0
  %v1006 = vmin.f32 %v974, 15.0
  %v1007 = vmin.f32 %v975, 15.0
  %v1008 = vround.ne.pseudo %v976
  %v1009 = vround.ne.pseudo %v977
  %v1010 = vround.ne.pseudo %v978
  %v1011 = vround.ne.pseudo %v979
  %v1012 = vround.ne.pseudo %v980
  %v1013 = vround.ne.pseudo %v981
  %v1014 = vround.ne.pseudo %v982
  %v1015 = vround.ne.pseudo %v983
  %v1016 = vround.ne.pseudo %v984
  %v1017 = vround.ne.pseudo %v985
  %v1018 = vround.ne.pseudo %v986
  %v1019 = vround.ne.pseudo %v987
  %v1020 = vround.ne.pseudo %v988
  %v1021 = vround.ne.pseudo %v989
  %v1022 = vround.ne.pseudo %v990
  %v1023 = vround.ne.pseudo %v991
  %v1024 = vround.ne.pseudo %v992
  %v1025 = vround.ne.pseudo %v993
  %v1026 = vround.ne.pseudo %v994
  %v1027 = vround.ne.pseudo %v995
  %v1028 = vround.ne.pseudo %v996
  %v1029 = vround.ne.pseudo %v997
  %v1030 = vround.ne.pseudo %v998
  %v1031 = vround.ne.pseudo %v999
  %v1032 = vround.ne.pseudo %v1000
  %v1033 = vround.ne.pseudo %v1001
  %v1034 = vround.ne.pseudo %v1002
  %v1035 = vround.ne.pseudo %v1003
  %v1036 = vround.ne.pseudo %v1004
  %v1037 = vround.ne.pseudo %v1005
  %v1038 = vround.ne.pseudo %v1006
  %v1039 = vround.ne.pseudo %v1007
  %v1040 = vmul.f32 %v1008, %v368
  %v1041 = vmul.f32 %v1009, %v369
  %v1042 = vmul.f32 %v1010, %v370
  %v1043 = vmul.f32 %v1011, %v371
  %v1044 = vmul.f32 %v1012, %v372
  %v1045 = vmul.f32 %v1013, %v373
  %v1046 = vmul.f32 %v1014, %v374
  %v1047 = vmul.f32 %v1015, %v375
  %v1048 = vmul.f32 %v1016, %v376
  %v1049 = vmul.f32 %v1017, %v377
  %v1050 = vmul.f32 %v1018, %v378
  %v1051 = vmul.f32 %v1019, %v379
  %v1052 = vmul.f32 %v1020, %v380
  %v1053 = vmul.f32 %v1021, %v381
  %v1054 = vmul.f32 %v1022, %v382
  %v1055 = vmul.f32 %v1023, %v383
  %v1056 = vmul.f32 %v1024, %v384
  %v1057 = vmul.f32 %v1025, %v385
  %v1058 = vmul.f32 %v1026, %v386
  %v1059 = vmul.f32 %v1027, %v387
  %v1060 = vmul.f32 %v1028, %v388
  %v1061 = vmul.f32 %v1029, %v389
  %v1062 = vmul.f32 %v1030, %v390
  %v1063 = vmul.f32 %v1031, %v391
  %v1064 = vmul.f32 %v1032, %v392
  %v1065 = vmul.f32 %v1033, %v393
  %v1066 = vmul.f32 %v1034, %v394
  %v1067 = vmul.f32 %v1035, %v395
  %v1068 = vmul.f32 %v1036, %v396
  %v1069 = vmul.f32 %v1037, %v397
  %v1070 = vmul.f32 %v1038, %v398
  %v1071 = vmul.f32 %v1039, %v399
  %v1072 = vadd.f32 %v1040, %v137
  %v1073 = vadd.f32 %v1041, %v138
  %v1074 = vadd.f32 %v1042, %v139
  %v1075 = vadd.f32 %v1043, %v140
  %v1076 = vadd.f32 %v1044, %v141
  %v1077 = vadd.f32 %v1045, %v142
  %v1078 = vadd.f32 %v1046, %v143
  %v1079 = vadd.f32 %v1047, %v144
  %v1080 = vadd.f32 %v1048, %v145
  %v1081 = vadd.f32 %v1049, %v146
  %v1082 = vadd.f32 %v1050, %v147
  %v1083 = vadd.f32 %v1051, %v148
  %v1084 = vadd.f32 %v1052, %v149
  %v1085 = vadd.f32 %v1053, %v150
  %v1086 = vadd.f32 %v1054, %v151
  %v1087 = vadd.f32 %v1055, %v152
  %v1088 = vadd.f32 %v1056, %v153
  %v1089 = vadd.f32 %v1057, %v154
  %v1090 = vadd.f32 %v1058, %v155
  %v1091 = vadd.f32 %v1059, %v156
  %v1092 = vadd.f32 %v1060, %v157
  %v1093 = vadd.f32 %v1061, %v158
  %v1094 = vadd.f32 %v1062, %v159
  %v1095 = vadd.f32 %v1063, %v160
  %v1096 = vadd.f32 %v1064, %v161
  %v1097 = vadd.f32 %v1065, %v162
  %v1098 = vadd.f32 %v1066, %v163
  %v1099 = vadd.f32 %v1067, %v164
  %v1100 = vadd.f32 %v1068, %v165
  %v1101 = vadd.f32 %v1069, %v166
  %v1102 = vadd.f32 %v1070, %v167
  %v1103 = vadd.f32 %v1071, %v168
  %1104 = vst.msk [vmem:[%s1] sm:$0xff] %vm40, %v1072
  %1105 = vst.msk [vmem:[%s1 + $0x8] sm:$0xff] %vm40, %v1073
  %1106 = vst.msk [vmem:[%s1 + $0x10] sm:$0xff] %vm40, %v1074
  %1107 = vst.msk [vmem:[%s1 + $0x18] sm:$0xff] %vm40, %v1075
  %1108 = vst.msk [vmem:[%s1 + $0x20] sm:$0xff] %vm40, %v1076
  %1109 = vst.msk [vmem:[%s1 + $0x28] sm:$0xff] %vm40, %v1077
  %1110 = vst.msk [vmem:[%s1 + $0x30] sm:$0xff] %vm40, %v1078
  %1111 = vst.msk [vmem:[%s1 + $0x38] sm:$0xff] %vm40, %v1079
  %1112 = vst.msk [vmem:[%s1 + $0x40] sm:$0xff] %vm40, %v1080
  %1113 = vst.msk [vmem:[%s1 + $0x48] sm:$0xff] %vm40, %v1081
  %1114 = vst.msk [vmem:[%s1 + $0x50] sm:$0xff] %vm40, %v1082
  %1115 = vst.msk [vmem:[%s1 + $0x58] sm:$0xff] %vm40, %v1083
  %1116 = vst.msk [vmem:[%s1 + $0x60] sm:$0xff] %vm40, %v1084
  %1117 = vst.msk [vmem:[%s1 + $0x68] sm:$0xff] %vm40, %v1085
  %1118 = vst.msk [vmem:[%s1 + $0x70] sm:$0xff] %vm40, %v1086
  %1119 = vst.msk [vmem:[%s1 + $0x78] sm:$0xff] %vm40, %v1087
  %1120 = vst.msk [vmem:[%s1 + $0x80] sm:$0xff] %vm40, %v1088
  %1121 = vst.msk [vmem:[%s1 + $0x88] sm:$0xff] %vm40, %v1089
  %1122 = vst.msk [vmem:[%s1 + $0x90] sm:$0xff] %vm40, %v1090
  %1123 = vst.msk [vmem:[%s1 + $0x98] sm:$0xff] %vm40, %v1091
  %1124 = vst.msk [vmem:[%s1 + $0xa0] sm:$0xff] %vm40, %v1092
  %1125 = vst.msk [vmem:[%s1 + $0xa8] sm:$0xff] %vm40, %v1093
  %1126 = vst.msk [vmem:[%s1 + $0xb0] sm:$0xff] %vm40, %v1094
  %1127 = vst.msk [vmem:[%s1 + $0xb8] sm:$0xff] %vm40, %v1095
  %1128 = vst.msk [vmem:[%s1 + $0xc0] sm:$0xff] %vm40, %v1096
  %1129 = vst.msk [vmem:[%s1 + $0xc8] sm:$0xff] %vm40, %v1097
  %1130 = vst.msk [vmem:[%s1 + $0xd0] sm:$0xff] %vm40, %v1098
  %1131 = vst.msk [vmem:[%s1 + $0xd8] sm:$0xff] %vm40, %v1099
  %1132 = vst.msk [vmem:[%s1 + $0xe0] sm:$0xff] %vm40, %v1100
  %1133 = vst.msk [vmem:[%s1 + $0xe8] sm:$0xff] %vm40, %v1101
  %1134 = vst.msk [vmem:[%s1 + $0xf0] sm:$0xff] %vm40, %v1102
  %1135 = vst.msk [vmem:[%s1 + $0xf8] sm:$0xff] %vm40, %v1103
  // Predicated region
  $region6: #{tpu_custom_call.1} parent=0 // pred_check
    _
  $region7: #{tpu_custom_call.1} parent=0 // pred_check_branch
    %1137 = sbr.rel (0) target = $region9
  $region8: #{tpu_custom_call.1} parent=0 // pred_region
    _
  $region9: #{tpu_custom_call.1} parent=0 // pred_fallthru
    _
  // Predicated region
  $region10: #{tpu_custom_call.1} parent=0 // pred_check
    _
  $region11: #{tpu_custom_call.1} parent=0 // pred_check_branch
    %1139 = sbr.rel (0) target = $region13
  $region12: #{tpu_custom_call.1} parent=0 // pred_region
    _
  $region13: #{tpu_custom_call.1} parent=0 // pred_fallthru
    _

</llo_original>
